<compile_context>
chip_gen: v5e
topology: v5e:2x2
jax: 0.10.0
libtpu: 0.0.40
codegen_flags: <defaults>
</compile_context>

<pallas_src>
import jax
import jax.numpy as jnp
from jax.experimental import pallas as pl
from jax.experimental.pallas import tpu as pltpu


def _make_kernel(C, HW, THW):
    needs_mask = (HW % THW) != 0       # static: mask only if the tail is padded
    inv_hw = 1.0 / float(HW)           # divide by TRUE element count, not padded

    def kernel(x_ref, w1_ref, w2_ref, o_ref, sum_acc, max_acc):
        # x_ref:  (1, C, THW)  one spatial tile of one batch element (native dtype)
        # w1_ref: (hidden, C)  fc1 weight (f32)
        # w2_ref: (C, hidden)  fc2 weight (f32)
        # o_ref:  (1, C, 1)    channel-attention weights for this batch element
        # sum_acc/max_acc: (C, 1) f32 running reductions (persist across grid)
        k = pl.program_id(1)

        @pl.when(k == 0)
        def _init():
            sum_acc[...] = jnp.zeros_like(sum_acc)
            max_acc[...] = jnp.full_like(max_acc, -jnp.inf)

        x = x_ref[0]                                        # (C, THW), native dtype

        if needs_mask:
            # Last tile is padded by the pipeline: mask padded columns so they
            # contribute 0 to the sum and never win the max.
            col = jax.lax.broadcasted_iota(jnp.int32, x.shape, 1) + k * THW
            valid = col < HW
            x_sum = jnp.where(valid, x, jnp.zeros((), x.dtype))
            x_max = jnp.where(valid, x, jnp.full((), jnp.finfo(x.dtype).min, x.dtype))
        else:
            x_sum = x
            x_max = x

        # Lane-axis reductions (XLU); sum accumulated in f32, max in native dtype.
        sum_acc[...] += jnp.sum(x_sum.astype(jnp.float32), axis=-1, keepdims=True)
        max_acc[...] = jnp.maximum(
            max_acc[...],
            jnp.max(x_max, axis=-1, keepdims=True).astype(jnp.float32),
        )

        @pl.when(k == pl.num_programs(1) - 1)
        def _finalize():
            avg = sum_acc[...] * jnp.float32(inv_hw)        # (C, 1)
            mx = max_acc[...]                               # (C, 1)
            w1 = w1_ref[...]                                # (hidden, C)
            w2 = w2_ref[...]                                # (C, hidden)
            h_avg = jnp.maximum(
                jnp.dot(w1, avg, preferred_element_type=jnp.float32), 0.0)
            h_max = jnp.maximum(
                jnp.dot(w1, mx, preferred_element_type=jnp.float32), 0.0)
            # fc2 is linear: fc2(h_avg) + fc2(h_max) == fc2(h_avg + h_max)
            y = jnp.dot(w2, h_avg + h_max,
                        preferred_element_type=jnp.float32)  # (C, 1)
            att = jax.nn.sigmoid(y)
            o_ref[...] = att[jnp.newaxis].astype(o_ref.dtype)  # (1, C, 1)

    return kernel


def channel_attention(x, w1, w2, *, x_block_bytes=2 * 1024 * 1024):
    """x: (B, C, H, W) NCHW.  w1: (C//16, C) fc1 weight.  w2: (C, C//16) fc2 weight.
    Returns (B, C, 1, 1) sigmoid channel-attention map (same as the PyTorch module)."""
    B, C, H, W = x.shape
    hidden, c_in = w1.shape
    assert c_in == C and w2.shape == (C, hidden)
    HW = H * W

    # Layout glue only (no HBM transpose): NCHW -> (B, C, HW) is a free reshape.
    x3 = x.reshape(B, C, HW)
    w1f = w1.astype(jnp.float32)        # pre-cast once, not per grid iteration
    w2f = w2.astype(jnp.float32)

    # Pick a streaming tile over HW: ~2 MiB per x block (=> ~4 MiB double
    # buffered) keeps every chip (v5e 16 MiB scoped default, v7x 64 MiB
    # physical) comfortable while staying well past the HBM-roofline knee.
    itemsize = jnp.dtype(x.dtype).itemsize
    max_thw = max(128, (x_block_bytes // (C * itemsize)) // 128 * 128)
    thw = HW if HW <= max_thw else max_thw      # full HW, or a multiple of 128
    n_hw_blocks = (HW + thw - 1) // thw

    out = pl.pallas_call(
        _make_kernel(C, HW, thw),
        out_shape=jax.ShapeDtypeStruct((B, C, 1), x.dtype),
        grid_spec=pltpu.PrefetchScalarGridSpec(
            num_scalar_prefetch=0,
            grid=(B, n_hw_blocks),
            in_specs=[
                pl.BlockSpec((1, C, thw), lambda b, k: (b, 0, k)),
                pl.BlockSpec((hidden, C), lambda b, k: (0, 0)),
                pl.BlockSpec((C, hidden), lambda b, k: (0, 0)),
            ],
            out_specs=pl.BlockSpec((1, C, 1), lambda b, k: (b, 0, 0)),
            scratch_shapes=[
                pltpu.VMEM((C, 1), jnp.float32),   # running sum
                pltpu.VMEM((C, 1), jnp.float32),   # running max
            ],
        ),
        compiler_params=pltpu.CompilerParams(
            dimension_semantics=("parallel", "arbitrary"),
        ),
    )(x3, w1f, w2f)

    return out.reshape(B, C, 1, 1)


def _reference(x, w1, w2):
    # Pure-JAX reference of the PyTorch forward (for a sanity check).
    B, C, H, W = x.shape
    xf = x.astype(jnp.float32)
    avg = jnp.mean(xf, axis=(2, 3))                          # (B, C)
    mx = jnp.max(xf, axis=(2, 3))                            # (B, C)

    def mlp(p):
        h = jnp.maximum(p @ w1.T.astype(jnp.float32), 0.0)
        return h @ w2.T.astype(jnp.float32)

    out = jax.nn.sigmoid(mlp(avg) + mlp(mx))                 # (B, C)
    return out.reshape(B, C, 1, 1).astype(x.dtype)


if __name__ == "__main__":
    # in_planes must be >= 16 since the module hardcodes in_planes // 16.
    B, C, H, W = 2, 64, 16, 16
    hidden = C // 16

    key = jax.random.PRNGKey(0)
    kx, k1, k2 = jax.random.split(key, 3)
    x = jax.random.normal(kx, (B, C, H, W), dtype=jnp.float32)
    # Deterministic synthetic weights (Conv2d 1x1 no-bias => plain (out, in) matrices).
    w1 = jax.random.normal(k1, (hidden, C), dtype=jnp.float32) * (1.0 / C ** 0.5)
    w2 = jax.random.normal(k2, (C, hidden), dtype=jnp.float32) * (1.0 / hidden ** 0.5)

    out = channel_attention(x, w1, w2)
    out = jax.block_until_ready(out)

    ref = _reference(x, w1, w2)
    assert out.shape == (B, C, 1, 1)
    assert jnp.allclose(out, ref, atol=1e-5, rtol=1e-5), "mismatch vs reference"

    print("KERNEL_OK")
</pallas_src>

<mosaic_0001>
module attributes {stable_mosaic.version = 11 : i64} {
  func.func @kernel(%arg0: i32, %arg1: i32, %arg2: memref<1x64x256xf32, #tpu.memory_space<vmem>>, %arg3: memref<4x64xf32, #tpu.memory_space<vmem>>, %arg4: memref<64x4xf32, #tpu.memory_space<vmem>>, %arg5: memref<1x64x1xf32, #tpu.memory_space<vmem>>, %arg6: memref<64x1xf32, #tpu.memory_space<vmem>>, %arg7: memref<64x1xf32, #tpu.memory_space<vmem>>) attributes {dimension_semantics = [#tpu.dimension_semantics<parallel>, #tpu.dimension_semantics<arbitrary>], iteration_bounds = array<i64: 2, 1>, scalar_prefetch = 0 : i64, scratch_operands = 2 : i64, tpu.core_type = #tpu.core_type<tc>, window_params = [{transform_indices = @transform_0, window_bounds = array<i64: 1, 64, 256>}, {pipeline_mode = #tpu.pipeline_mode<synchronous>, transform_indices = @transform_1, window_bounds = array<i64: 4, 64>}, {pipeline_mode = #tpu.pipeline_mode<synchronous>, transform_indices = @transform_2, window_bounds = array<i64: 64, 4>}, {transform_indices = @transform_3, window_bounds = array<i64: 1, 64, 1>}]} {
    %c0_i32 = arith.constant 0 : i32
    %0 = arith.cmpi eq, %arg1, %c0_i32 : i32
    %1 = arith.extui %0 : i1 to i32
    %c0_i32_0 = arith.constant 0 : i32
    %2 = arith.cmpi ne, %1, %c0_i32_0 : i32
    scf.if %2 {
      %cst_14 = arith.constant 0.000000e+00 : f32
      %18 = vector.broadcast %cst_14 : f32 to vector<64x1xf32>
      %c0_15 = arith.constant 0 : index
      %c0_16 = arith.constant 0 : index
      %19 = vector.load %arg6[%c0_15, %c0_16] : memref<64x1xf32, #tpu.memory_space<vmem>>, vector<64x1xf32>
      tpu.vector_store %arg6[%c0_15, %c0_16], %18 {strides = array<i32>} : memref<64x1xf32, #tpu.memory_space<vmem>>, vector<64x1xf32>,
      %cst_17 = arith.constant 0xFF800000 : f32
      %20 = vector.broadcast %cst_17 : f32 to vector<64x1xf32>
      %c0_18 = arith.constant 0 : index
      %c0_19 = arith.constant 0 : index
      %21 = vector.load %arg7[%c0_18, %c0_19] : memref<64x1xf32, #tpu.memory_space<vmem>>, vector<64x1xf32>
      tpu.vector_store %arg7[%c0_18, %c0_19], %20 {strides = array<i32>} : memref<64x1xf32, #tpu.memory_space<vmem>>, vector<64x1xf32>,
    } else {
    }
    %c0 = arith.constant 0 : index
    %c0_1 = arith.constant 0 : index
    %c0_2 = arith.constant 0 : index
    %3 = vector.load %arg2[%c0, %c0_1, %c0_2] : memref<1x64x256xf32, #tpu.memory_space<vmem>>, vector<1x64x256xf32>
    %4 = vector.shape_cast %3 : vector<1x64x256xf32> to vector<64x256xf32>
    %c0_3 = arith.constant 0 : index
    %c0_4 = arith.constant 0 : index
    %5 = vector.load %arg6[%c0_3, %c0_4] : memref<64x1xf32, #tpu.memory_space<vmem>>, vector<64x1xf32>
    %cst = arith.constant dense<0.000000e+00> : vector<64xf32>
    %6 = vector.multi_reduction <add>, %4, %cst [1] : vector<64x256xf32> to vector<64xf32>
    %7 = vector.shape_cast %6 : vector<64xf32> to vector<64x1xf32>
    %8 = arith.addf %5, %7 : vector<64x1xf32>
    %c0_5 = arith.constant 0 : index
    %c0_6 = arith.constant 0 : index
    %9 = vector.load %arg6[%c0_5, %c0_6] : memref<64x1xf32, #tpu.memory_space<vmem>>, vector<64x1xf32>
    tpu.vector_store %arg6[%c0_5, %c0_6], %8 {strides = array<i32>} : memref<64x1xf32, #tpu.memory_space<vmem>>, vector<64x1xf32>,
    %c0_7 = arith.constant 0 : index
    %c0_8 = arith.constant 0 : index
    %10 = vector.load %arg7[%c0_7, %c0_8] : memref<64x1xf32, #tpu.memory_space<vmem>>, vector<64x1xf32>
    %cst_9 = arith.constant dense<0xFF800000> : vector<64xf32>
    %11 = vector.multi_reduction <maximumf>, %4, %cst_9 [1] : vector<64x256xf32> to vector<64xf32>
    %12 = vector.shape_cast %11 : vector<64xf32> to vector<64x1xf32>
    %13 = arith.maximumf %10, %12 : vector<64x1xf32>
    %c0_10 = arith.constant 0 : index
    %c0_11 = arith.constant 0 : index
    %14 = vector.load %arg7[%c0_10, %c0_11] : memref<64x1xf32, #tpu.memory_space<vmem>>, vector<64x1xf32>
    tpu.vector_store %arg7[%c0_10, %c0_11], %13 {strides = array<i32>} : memref<64x1xf32, #tpu.memory_space<vmem>>, vector<64x1xf32>,
    %c0_i32_12 = arith.constant 0 : i32
    %15 = arith.cmpi eq, %arg1, %c0_i32_12 : i32
    %16 = arith.extui %15 : i1 to i32
    %c0_i32_13 = arith.constant 0 : i32
    %17 = arith.cmpi ne, %16, %c0_i32_13 : i32
    scf.if %17 {
      %c0_14 = arith.constant 0 : index
      %c0_15 = arith.constant 0 : index
      %18 = vector.load %arg6[%c0_14, %c0_15] : memref<64x1xf32, #tpu.memory_space<vmem>>, vector<64x1xf32>
      %cst_16 = arith.constant 3.906250e-03 : f32
      %19 = vector.broadcast %cst_16 : f32 to vector<64x1xf32>
      %20 = arith.mulf %18, %19 : vector<64x1xf32>
      %c0_17 = arith.constant 0 : index
      %c0_18 = arith.constant 0 : index
      %21 = vector.load %arg7[%c0_17, %c0_18] : memref<64x1xf32, #tpu.memory_space<vmem>>, vector<64x1xf32>
      %c0_19 = arith.constant 0 : index
      %c0_20 = arith.constant 0 : index
      %22 = vector.load %arg3[%c0_19, %c0_20] : memref<4x64xf32, #tpu.memory_space<vmem>>, vector<4x64xf32>
      %c0_21 = arith.constant 0 : index
      %c0_22 = arith.constant 0 : index
      %23 = vector.load %arg4[%c0_21, %c0_22] : memref<64x4xf32, #tpu.memory_space<vmem>>, vector<64x4xf32>
      %cst_23 = arith.constant dense<0.000000e+00> : vector<4x1xf32>
      %24 = tpu.matmul %22, %20, %cst_23 {dimension_numbers = #tpu.dot_dimension_numbers<[1], [0], [0], [1], [0, 0, 1, 1], [], []>} : vector<4x64xf32>, vector<64x1xf32>, vector<4x1xf32> -> vector<4x1xf32>
      %cst_24 = arith.constant 0.000000e+00 : f32
      %25 = vector.broadcast %cst_24 : f32 to vector<4x1xf32>
      %26 = arith.maximumf %24, %25 : vector<4x1xf32>
      %cst_25 = arith.constant dense<0.000000e+00> : vector<4x1xf32>
      %27 = tpu.matmul %22, %21, %cst_25 {dimension_numbers = #tpu.dot_dimension_numbers<[1], [0], [0], [1], [0, 0, 1, 1], [], []>} : vector<4x64xf32>, vector<64x1xf32>, vector<4x1xf32> -> vector<4x1xf32>
      %cst_26 = arith.constant 0.000000e+00 : f32
      %28 = vector.broadcast %cst_26 : f32 to vector<4x1xf32>
      %29 = arith.maximumf %27, %28 : vector<4x1xf32>
      %30 = arith.addf %26, %29 : vector<4x1xf32>
      %cst_27 = arith.constant dense<0.000000e+00> : vector<64x1xf32>
      %31 = tpu.matmul %23, %30, %cst_27 {dimension_numbers = #tpu.dot_dimension_numbers<[1], [0], [0], [1], [0, 0, 1, 1], [], []>} : vector<64x4xf32>, vector<4x1xf32>, vector<64x1xf32> -> vector<64x1xf32>
      %32 = arith.negf %31 : vector<64x1xf32>
      %33 = math.exp %32 : vector<64x1xf32>
      %cst_28 = arith.constant 1.000000e+00 : f32
      %34 = vector.broadcast %cst_28 : f32 to vector<64x1xf32>
      %35 = arith.addf %34, %33 : vector<64x1xf32>
      %36 = arith.divf %34, %35 : vector<64x1xf32>
      %37 = vector.shape_cast %36 : vector<64x1xf32> to vector<1x64x1xf32>
      %c0_29 = arith.constant 0 : index
      %c0_30 = arith.constant 0 : index
      %c0_31 = arith.constant 0 : index
      %38 = vector.load %arg5[%c0_29, %c0_30, %c0_31] : memref<1x64x1xf32, #tpu.memory_space<vmem>>, vector<1x64x1xf32>
      tpu.vector_store %arg5[%c0_29, %c0_30, %c0_31], %37 {strides = array<i32>} : memref<1x64x1xf32, #tpu.memory_space<vmem>>, vector<1x64x1xf32>,
    } else {
    }
    return
  }
  func.func @transform_0(%arg0: i32, %arg1: i32) -> (i32, i32, i32) {
    %c0_i32 = arith.constant 0 : i32
    %c0_i32_0 = arith.constant 0 : i32
    return %arg0, %c0_i32, %arg1 : i32, i32, i32
  }
  func.func @transform_1(%arg0: i32, %arg1: i32) -> (i32, i32) {
    %c0_i32 = arith.constant 0 : i32
    %c0_i32_0 = arith.constant 0 : i32
    %c0_i32_1 = arith.constant 0 : i32
    return %c0_i32, %c0_i32_0 : i32, i32
  }
  func.func @transform_2(%arg0: i32, %arg1: i32) -> (i32, i32) {
    %c0_i32 = arith.constant 0 : i32
    %c0_i32_0 = arith.constant 0 : i32
    %c0_i32_1 = arith.constant 0 : i32
    return %c0_i32, %c0_i32_0 : i32, i32
  }
  func.func @transform_3(%arg0: i32, %arg1: i32) -> (i32, i32, i32) {
    %c0_i32 = arith.constant 0 : i32
    %c0_i32_0 = arith.constant 0 : i32
    %c0_i32_1 = arith.constant 0 : i32
    return %arg0, %c0_i32, %c0_i32_0 : i32, i32, i32
  }
}

</mosaic_0001>

<llo_original>
// kernel: tpu_custom_call.1
$region0: #{tpu_custom_call.1}
  #allocation0 [shape = 'u32[]', space=smem, size = 0x4, offset = 0x4, fixed_abs, tag = 'smem constant byte address 0x4 - core index']
  #allocation1 [shape = 'u32[72,128]{1,0:T(1,128)}', space=vmem, size = 0x9000, scoped, tag = 'internal scratch']
  #allocation2 [shape = 'f32[64,1]{1,0:T(8,128)}', space=vmem, size = 0x8000, scoped, tag = 'scratch operand']
  #allocation3 [shape = 'f32[64,1]{1,0:T(8,128)}', space=vmem, size = 0x8000, scoped, tag = 'scratch operand']
  %s0 = inlined_call_operand.hbm [shape: f32[2,64,256], index: 0, kind: input, shape index: {}]
  %s1 = inlined_call_operand.vmem [shape: f32[4,64], index: 1, kind: input, shape index: {}]
  %s2 = inlined_call_operand.vmem [shape: f32[64,4], index: 2, kind: input, shape index: {}]
  %s3 = inlined_call_operand.vmem [shape: f32[2,64,1], index: 3, kind: output, shape index: {}]
  %s4 = sld [smem:[#allocation0]]
  $region57: #{tpu_custom_call.1} parent=0
    _
  %s6 = ssub.s32 1, %s4
  %s7 = scalar_select 0, %s6, %s4
  $region1: #{tpu_custom_call.1} parent=0
    #allocation4 [shape = 'u8[131072]{0}', space=vmem, size = 0x20000, scoped, tag = 'input window, operand 0']
    #allocation5 [shape = 's32[2]{0}', space=sflag, size = 0x8, scoped, tag = 'scoped memory for tpu_custom_call.1']
    %8 = vsyncpa [#allocation5], 0
    %s9 = scalar_lea.sflag [#allocation5], 1
    %10 = vsyncpa %s9, 0
    loop: start=0, step=1, limit=4
    $region2: #{tpu_custom_call.1} parent=1 // loop_pre_header
      _
    $region3: #{tpu_custom_call.1} parent=1 // loop_header
      %s12 = sphi 0, %s16
      %p13 = scmp.ge.s32.totalorder %s12, 4
      %s19 = sphi 0, %s31
      %s20 = sphi 0, %s27
      %s21 = sphi 0, %s19
      %s22 = sphi 0, %s20
      %s23 = sphi 0, %s21
      %s24 = sphi 0, %s22
      %s36 = sphi 0, %s38
      %s39 = sphi 0, %s36
      %s40 = sphi 0, %s39
      %s56 = sphi 0, %s40
      %s60 = sphi 0, %s60
      %s62 = sphi 0, %s60
      %s63 = sphi 0, %s62
      %s77 = sphi 0, %s63
      %s81 = sphi 0, %s81
      %s83 = sphi 0, %s81
      %s84 = sphi 0, %s83
      %s98 = sphi 0, %s84
      %s104 = sphi 0, %s106
      %s107 = sphi 0, %s104
      %s108 = sphi 0, %s107
      %s124 = sphi 0, %s108
    $region4: #{tpu_custom_call.1} parent=1 // loop_header_branch
      %15 = sbr.rel (%p13) target = $region8
    $region5: #{tpu_custom_call.1} parent=1 // loop_body
      %s17 = ssub.s32 %s12, 1
      %s18 = ssub.s32 %s12, 2
      %s25 = sadd.s32 1, %s20
      %p26 = scmp.ge.s32.totalorder %s25, 1
      %s27 = scalar_select %p26, 0, %s25
      %s28 = sadd.s32 1, %s19
      %s29 = scalar_select %p26, %s28, %s19
      %p30 = scmp.ge.s32.totalorder %s29, 2
      %s31 = scalar_select %p30, 0, %s29
      %s32 = ssub.s32 %s19, %s31
      %s33 = ssub.s32 %s20, %s27
      %s34 = sor.u32 %s32, %s33
      %p35 = scmp.eq.s32.totalorder %s34, 0
      %s37 = sadd.s32 %s36, 1
      %s38 = scalar_select %p35, %s36, %s37
      %p41 = pneg %p35
      %p42 = scmp.eq.s32.totalorder %s12, 1
      %p43 = por %p41, %p42
      %p44 = scmp.ne.s32.totalorder %s36, %s39
      %p45 = scmp.eq.s32.totalorder %s12, 0
      %p46 = por %p44, %p45
      %p47 = scmp.ne.s32.totalorder %s36, %s39
      %p48 = scmp.eq.s32.totalorder %s17, 1
      %p49 = por %p47, %p48
      %p50 = scmp.ne.s32.totalorder %s39, %s40
      %p51 = scmp.eq.s32.totalorder %s17, 0
      %p52 = por %p50, %p51
      %p53 = scmp.ne.s32.totalorder %s39, %s40
      %p54 = scmp.eq.s32.totalorder %s18, 1
      %p55 = por %p53, %p54
      %p57 = scmp.ne.s32.totalorder %s40, %s56
      %p58 = scmp.eq.s32.totalorder %s18, 0
      %p59 = por %p57, %p58
      %s61 = sadd.s32 %s60, 1
      %p64 = scmp.eq.s32.totalorder %s12, 1
      %p65 = scmp.ne.s32.totalorder %s60, %s62
      %p66 = scmp.eq.s32.totalorder %s12, 0
      %p67 = por %p65, %p66
      %p68 = scmp.ne.s32.totalorder %s60, %s62
      %p69 = scmp.eq.s32.totalorder %s17, 1
      %p70 = por %p68, %p69
      %p71 = scmp.ne.s32.totalorder %s62, %s63
      %p72 = scmp.eq.s32.totalorder %s17, 0
      %p73 = por %p71, %p72
      %p74 = scmp.ne.s32.totalorder %s62, %s63
      %p75 = scmp.eq.s32.totalorder %s18, 1
      %p76 = por %p74, %p75
      %p78 = scmp.ne.s32.totalorder %s63, %s77
      %p79 = scmp.eq.s32.totalorder %s18, 0
      %p80 = por %p78, %p79
      %s82 = sadd.s32 %s81, 1
      %p85 = scmp.eq.s32.totalorder %s12, 1
      %p86 = scmp.ne.s32.totalorder %s81, %s83
      %p87 = scmp.eq.s32.totalorder %s12, 0
      %p88 = por %p86, %p87
      %p89 = scmp.ne.s32.totalorder %s81, %s83
      %p90 = scmp.eq.s32.totalorder %s17, 1
      %p91 = por %p89, %p90
      %p92 = scmp.ne.s32.totalorder %s83, %s84
      %p93 = scmp.eq.s32.totalorder %s17, 0
      %p94 = por %p92, %p93
      %p95 = scmp.ne.s32.totalorder %s83, %s84
      %p96 = scmp.eq.s32.totalorder %s18, 1
      %p97 = por %p95, %p96
      %p99 = scmp.ne.s32.totalorder %s84, %s98
      %p100 = scmp.eq.s32.totalorder %s18, 0
      %p101 = por %p99, %p100
      %s102 = ssub.s32 %s19, %s31
      %p103 = scmp.eq.s32.totalorder %s102, 0
      %s105 = sadd.s32 %s104, 1
      %s106 = scalar_select %p103, %s104, %s105
      %p109 = pneg %p103
      %p110 = scmp.eq.s32.totalorder %s12, 1
      %p111 = por %p109, %p110
      %p112 = scmp.ne.s32.totalorder %s104, %s107
      %p113 = scmp.eq.s32.totalorder %s12, 0
      %p114 = por %p112, %p113
      %p115 = scmp.ne.s32.totalorder %s104, %s107
      %p116 = scmp.eq.s32.totalorder %s17, 1
      %p117 = por %p115, %p116
      %p118 = scmp.ne.s32.totalorder %s107, %s108
      %p119 = scmp.eq.s32.totalorder %s17, 0
      %p120 = por %p118, %p119
      %p121 = scmp.ne.s32.totalorder %s107, %s108
      %p122 = scmp.eq.s32.totalorder %s18, 1
      %p123 = por %p121, %p122
      %p125 = scmp.ne.s32.totalorder %s108, %s124
      %p126 = scmp.eq.s32.totalorder %s18, 0
      %p127 = por %p125, %p126
      %p128 = scmp.le.s32.totalorder 1, %s12
      %p129 = scmp.lt.s32.totalorder %s12, 3
      %p130 = pnand %p128, %p129
      %p131 = pneg %p130
      // Predicated region
      $region9: #{tpu_custom_call.1} parent=5 // pred_check
        _
      $region10: #{tpu_custom_call.1} parent=5 // pred_check_branch
        %133 = sbr.rel (%p130) target = $region12
      $region11: #{tpu_custom_call.1} parent=5 // pred_region
        %s134 = ssub.s32 %s12, 1
        // Predicated region
        $region13: #{tpu_custom_call.1} parent=11 // pred_check
          %p135 = pneg %p73
        $region14: #{tpu_custom_call.1} parent=11 // pred_check_branch
          %137 = sbr.rel (%p135) target = $region16
        $region15: #{tpu_custom_call.1} parent=11 // pred_region
          _
        $region16: #{tpu_custom_call.1} parent=11 // pred_fallthru
          _
        // Predicated region
        $region17: #{tpu_custom_call.1} parent=11 // pred_check
          %p138 = pneg %p94
        $region18: #{tpu_custom_call.1} parent=11 // pred_check_branch
          %140 = sbr.rel (%p138) target = $region20
        $region19: #{tpu_custom_call.1} parent=11 // pred_region
          _
        $region20: #{tpu_custom_call.1} parent=11 // pred_fallthru
          _
      $region12: #{tpu_custom_call.1} parent=5 // pred_fallthru
        _
      %p141 = scmp.lt.s32.totalorder %s12, 2
      // Predicated region
      $region21: #{tpu_custom_call.1} parent=5 // pred_check
        %p142 = pneg %p141
      $region22: #{tpu_custom_call.1} parent=5 // pred_check_branch
        %144 = sbr.rel (%p142) target = $region24
      $region23: #{tpu_custom_call.1} parent=5 // pred_region
        // Predicated region
        $region25: #{tpu_custom_call.1} parent=23 // pred_check
          %p145 = pneg %p46
        $region26: #{tpu_custom_call.1} parent=23 // pred_check_branch
          %147 = sbr.rel (%p145) target = $region28
        $region27: #{tpu_custom_call.1} parent=23 // pred_region
          %s148 = sand.u32 %s36, 1
          %s149 = scalar_lea.sflag [#allocation5], %s148
          %s150 = sand.u32 %s36, 1
          %s151 = smul.addr %s150, 128
          %s152 = scalar_lea.vmem [#allocation4], %s151
          %s153 = smul.u32 2, %s20
          %155 = vsyncadd %s149, 0
          %s156 = smul.addr %s19, 16
          %s157 = sadd.s32 %s153, %s156
          %s158 = smul.addr %s157, 8
          %s159 = scalar_lea.hbm %s0, %s158
          %s160 = sshll.u32 %s159, 4
          %s161 = int_to_ptr.hbm [resolvable:$true] %s160
          %s162 = sshll.u32 %s152, 4
          %s163 = int_to_ptr.vmem [resolvable:$true] %s162
          %168 = dma.hbm_to_vmem [thread:$0]  %s161, 2048, %s163, %s149, 256, 256, 16
        $region28: #{tpu_custom_call.1} parent=23 // pred_fallthru
          _
      $region24: #{tpu_custom_call.1} parent=5 // pred_fallthru
        _
      %p169 = scmp.le.s32.totalorder 1, %s12
      %p170 = scmp.lt.s32.totalorder %s12, 3
      %p171 = pnand %p169, %p170
      %p172 = pneg %p171
      // Predicated region
      $region29: #{tpu_custom_call.1} parent=5 // pred_check
        _
      $region30: #{tpu_custom_call.1} parent=5 // pred_check_branch
        %174 = sbr.rel (%p171) target = $region32
      $region31: #{tpu_custom_call.1} parent=5 // pred_region
        %s175 = ssub.s32 %s12, 1
        %s176 = sand.u32 %s39, 1
        %s177 = scalar_lea.sflag [#allocation5], %s176
        %s178 = sand.u32 %s39, 1
        %s179 = smul.addr %s178, 128
        %s180 = scalar_lea.vmem [#allocation4], %s179
        // Predicated region
        $region33: #{tpu_custom_call.1} parent=31 // pred_check
          %p181 = pneg %p52
        $region34: #{tpu_custom_call.1} parent=31 // pred_check_branch
          %183 = sbr.rel (%p181) target = $region36
        $region35: #{tpu_custom_call.1} parent=31 // pred_region
          %185 = dma.done %s177, 2048
        $region36: #{tpu_custom_call.1} parent=31 // pred_fallthru
          _
        %s186 = sand.u32 %s39, 1
        %s187 = scalar_lea.sflag [#allocation5], %s186
        %s188 = sand.u32 %s39, 1
        %s189 = smul.addr %s188, 128
        %s190 = scalar_lea.vmem [#allocation4], %s189
        %p191 = pneg %p52
        %p192 = pneg %p49
        %p193 = pneg %p73
        %p194 = pneg %p70
        %p195 = pneg %p94
        %p196 = pneg %p91
        %p197 = pneg %p120
        %p198 = pneg %p117
        %p199 = scmp.lt.s32.totalorder %s21, 1
        %s200 = scalar_select %p199, %s21, 1
        %s201 = smul.addr %s200, 8
        %s202 = smul.addr %s201, 8
        %s203 = scalar_lea.vmem %s3, %s202
        %s204 = smul.u32 2, %s22
        %p205 = scmp.lt.s32.totalorder %s21, 1
        %s206 = scalar_select %p205, %s21, 1
        %s207 = smul.addr %s206, 8
        %s208 = smul.addr %s207, 8
        %s209 = scalar_lea.vmem %s3, %s208
        %p210 = scmp.eq.s32.totalorder %s22, 0
        // Predicated region
        $region37: #{tpu_custom_call.1} parent=31 // pred_check
          %p211 = pneg %p210
        $region38: #{tpu_custom_call.1} parent=31 // pred_check_branch
          %213 = sbr.rel (%p211) target = $region40
        $region39: #{tpu_custom_call.1} parent=31 // pred_region
          %vm214 = vcmask 7168
          %215 = vst.msk [vmem:[#allocation2] sm:$0xff] %vm214, 0.0
          %216 = vst.msk [vmem:[#allocation2 + $0x8] sm:$0xff] %vm214, 0.0
          %217 = vst.msk [vmem:[#allocation2 + $0x10] sm:$0xff] %vm214, 0.0
          %218 = vst.msk [vmem:[#allocation2 + $0x18] sm:$0xff] %vm214, 0.0
          %219 = vst.msk [vmem:[#allocation2 + $0x20] sm:$0xff] %vm214, 0.0
          %220 = vst.msk [vmem:[#allocation2 + $0x28] sm:$0xff] %vm214, 0.0
          %221 = vst.msk [vmem:[#allocation2 + $0x30] sm:$0xff] %vm214, 0.0
          %222 = vst.msk [vmem:[#allocation2 + $0x38] sm:$0xff] %vm214, 0.0
          %223 = vst.msk [vmem:[#allocation3] sm:$0xff] %vm214, -inf
          %224 = vst.msk [vmem:[#allocation3 + $0x8] sm:$0xff] %vm214, -inf
          %225 = vst.msk [vmem:[#allocation3 + $0x10] sm:$0xff] %vm214, -inf
          %226 = vst.msk [vmem:[#allocation3 + $0x18] sm:$0xff] %vm214, -inf
          %227 = vst.msk [vmem:[#allocation3 + $0x20] sm:$0xff] %vm214, -inf
          %228 = vst.msk [vmem:[#allocation3 + $0x28] sm:$0xff] %vm214, -inf
          %229 = vst.msk [vmem:[#allocation3 + $0x30] sm:$0xff] %vm214, -inf
          %230 = vst.msk [vmem:[#allocation3 + $0x38] sm:$0xff] %vm214, -inf
        $region40: #{tpu_custom_call.1} parent=31 // pred_fallthru
          _
        %v231 = vld [vmem:[%s180] sm:$0xff]
        %v232 = vld [vmem:[%s180 + $0x8] sm:$0xff]
        %v233 = vld [vmem:[%s180 + $0x10] sm:$0xff]
        %v234 = vld [vmem:[%s180 + $0x18] sm:$0xff]
        %v235 = vld [vmem:[%s180 + $0x20] sm:$0xff]
        %v236 = vld [vmem:[%s180 + $0x28] sm:$0xff]
        %v237 = vld [vmem:[%s180 + $0x30] sm:$0xff]
        %v238 = vld [vmem:[%s180 + $0x38] sm:$0xff]
        %v239 = vld [vmem:[%s180 + $0x40] sm:$0xff]
        %v240 = vld [vmem:[%s180 + $0x48] sm:$0xff]
        %v241 = vld [vmem:[%s180 + $0x50] sm:$0xff]
        %v242 = vld [vmem:[%s180 + $0x58] sm:$0xff]
        %v243 = vld [vmem:[%s180 + $0x60] sm:$0xff]
        %v244 = vld [vmem:[%s180 + $0x68] sm:$0xff]
        %v245 = vld [vmem:[%s180 + $0x70] sm:$0xff]
        %v246 = vld [vmem:[%s180 + $0x78] sm:$0xff]
        %v247 = vld [vmem:[#allocation2] sm:$0xff]
        %v248 = vld [vmem:[#allocation2 + $0x8] sm:$0xff]
        %v249 = vld [vmem:[#allocation2 + $0x10] sm:$0xff]
        %v250 = vld [vmem:[#allocation2 + $0x18] sm:$0xff]
        %v251 = vld [vmem:[#allocation2 + $0x20] sm:$0xff]
        %v252 = vld [vmem:[#allocation2 + $0x28] sm:$0xff]
        %v253 = vld [vmem:[#allocation2 + $0x30] sm:$0xff]
        %v254 = vld [vmem:[#allocation2 + $0x38] sm:$0xff]
        %v255 = vadd.f32 %v231, %v232
        %256 = vadd.xlane.f32.xlu0 %v255
        %v257 = vpop.xlane.xlu0 %256
        %v258 = vadd.f32 %v233, %v234
        %259 = vadd.xlane.f32.xlu0 %v258
        %v260 = vpop.xlane.xlu0 %259
        %v261 = vadd.f32 %v235, %v236
        %262 = vadd.xlane.f32.xlu0 %v261
        %v263 = vpop.xlane.xlu0 %262
        %v264 = vadd.f32 %v237, %v238
        %265 = vadd.xlane.f32.xlu0 %v264
        %v266 = vpop.xlane.xlu0 %265
        %v267 = vadd.f32 %v239, %v240
        %268 = vadd.xlane.f32.xlu0 %v267
        %v269 = vpop.xlane.xlu0 %268
        %v270 = vadd.f32 %v241, %v242
        %271 = vadd.xlane.f32.xlu0 %v270
        %v272 = vpop.xlane.xlu0 %271
        %v273 = vadd.f32 %v243, %v244
        %274 = vadd.xlane.f32.xlu0 %v273
        %v275 = vpop.xlane.xlu0 %274
        %v276 = vadd.f32 %v245, %v246
        %277 = vadd.xlane.f32.xlu0 %v276
        %v278 = vpop.xlane.xlu0 %277
        %v279 = vadd.f32 %v247, %v257
        %v280 = vadd.f32 %v248, %v260
        %v281 = vadd.f32 %v249, %v263
        %v282 = vadd.f32 %v250, %v266
        %v283 = vadd.f32 %v251, %v269
        %v284 = vadd.f32 %v252, %v272
        %v285 = vadd.f32 %v253, %v275
        %v286 = vadd.f32 %v254, %v278
        %vm287 = vcmask 7168
        %288 = vst.msk [vmem:[#allocation2] sm:$0xff] %vm287, %v279
        %289 = vst.msk [vmem:[#allocation2 + $0x8] sm:$0xff] %vm287, %v280
        %290 = vst.msk [vmem:[#allocation2 + $0x10] sm:$0xff] %vm287, %v281
        %291 = vst.msk [vmem:[#allocation2 + $0x18] sm:$0xff] %vm287, %v282
        %292 = vst.msk [vmem:[#allocation2 + $0x20] sm:$0xff] %vm287, %v283
        %293 = vst.msk [vmem:[#allocation2 + $0x28] sm:$0xff] %vm287, %v284
        %294 = vst.msk [vmem:[#allocation2 + $0x30] sm:$0xff] %vm287, %v285
        %295 = vst.msk [vmem:[#allocation2 + $0x38] sm:$0xff] %vm287, %v286
        %v296 = vld [vmem:[#allocation3] sm:$0xff]
        %v297 = vld [vmem:[#allocation3 + $0x8] sm:$0xff]
        %v298 = vld [vmem:[#allocation3 + $0x10] sm:$0xff]
        %v299 = vld [vmem:[#allocation3 + $0x18] sm:$0xff]
        %v300 = vld [vmem:[#allocation3 + $0x20] sm:$0xff]
        %v301 = vld [vmem:[#allocation3 + $0x28] sm:$0xff]
        %v302 = vld [vmem:[#allocation3 + $0x30] sm:$0xff]
        %v303 = vld [vmem:[#allocation3 + $0x38] sm:$0xff]
        %v304 = vmax.f32 %v231, %v232
        %305 = vmax.xlane.f32.xlu0 %v304
        %v306 = vpop.xlane.xlu0 %305
        %v307 = vmax.f32 %v233, %v234
        %308 = vmax.xlane.f32.xlu0 %v307
        %v309 = vpop.xlane.xlu0 %308
        %v310 = vmax.f32 %v235, %v236
        %311 = vmax.xlane.f32.xlu0 %v310
        %v312 = vpop.xlane.xlu0 %311
        %v313 = vmax.f32 %v237, %v238
        %314 = vmax.xlane.f32.xlu0 %v313
        %v315 = vpop.xlane.xlu0 %314
        %v316 = vmax.f32 %v239, %v240
        %317 = vmax.xlane.f32.xlu0 %v316
        %v318 = vpop.xlane.xlu0 %317
        %v319 = vmax.f32 %v241, %v242
        %320 = vmax.xlane.f32.xlu0 %v319
        %v321 = vpop.xlane.xlu0 %320
        %v322 = vmax.f32 %v243, %v244
        %323 = vmax.xlane.f32.xlu0 %v322
        %v324 = vpop.xlane.xlu0 %323
        %v325 = vmax.f32 %v245, %v246
        %326 = vmax.xlane.f32.xlu0 %v325
        %v327 = vpop.xlane.xlu0 %326
        %v328 = vmax.f32 %v296, %v306
        %v329 = vmax.f32 %v297, %v309
        %v330 = vmax.f32 %v298, %v312
        %v331 = vmax.f32 %v299, %v315
        %v332 = vmax.f32 %v300, %v318
        %v333 = vmax.f32 %v301, %v321
        %v334 = vmax.f32 %v302, %v324
        %v335 = vmax.f32 %v303, %v327
        %336 = vst.msk [vmem:[#allocation3] sm:$0xff] %vm287, %v328
        %337 = vst.msk [vmem:[#allocation3 + $0x8] sm:$0xff] %vm287, %v329
        %338 = vst.msk [vmem:[#allocation3 + $0x10] sm:$0xff] %vm287, %v330
        %339 = vst.msk [vmem:[#allocation3 + $0x18] sm:$0xff] %vm287, %v331
        %340 = vst.msk [vmem:[#allocation3 + $0x20] sm:$0xff] %vm287, %v332
        %341 = vst.msk [vmem:[#allocation3 + $0x28] sm:$0xff] %vm287, %v333
        %342 = vst.msk [vmem:[#allocation3 + $0x30] sm:$0xff] %vm287, %v334
        %343 = vst.msk [vmem:[#allocation3 + $0x38] sm:$0xff] %vm287, %v335
        // Predicated region
        $region41: #{tpu_custom_call.1} parent=31 // pred_check
          %p344 = pneg %p210
        $region42: #{tpu_custom_call.1} parent=31 // pred_check_branch
          %346 = sbr.rel (%p344) target = $region44
        $region43: #{tpu_custom_call.1} parent=31 // pred_region
          %v347 = vld [vmem:[#allocation2] sm:$0xff]
          %v348 = vld [vmem:[#allocation2 + $0x8] sm:$0xff]
          %v349 = vld [vmem:[#allocation2 + $0x10] sm:$0xff]
          %v350 = vld [vmem:[#allocation2 + $0x18] sm:$0xff]
          %v351 = vld [vmem:[#allocation2 + $0x20] sm:$0xff]
          %v352 = vld [vmem:[#allocation2 + $0x28] sm:$0xff]
          %v353 = vld [vmem:[#allocation2 + $0x30] sm:$0xff]
          %v354 = vld [vmem:[#allocation2 + $0x38] sm:$0xff]
          %v355 = vmul.f32 %v347, 0.00390625
          %v356 = vmul.f32 %v348, 0.00390625
          %v357 = vmul.f32 %v349, 0.00390625
          %v358 = vmul.f32 %v350, 0.00390625
          %v359 = vmul.f32 %v351, 0.00390625
          %v360 = vmul.f32 %v352, 0.00390625
          %v361 = vmul.f32 %v353, 0.00390625
          %v362 = vmul.f32 %v354, 0.00390625
          %v363 = vld [vmem:[#allocation3] sm:$0xff]
          %v364 = vld [vmem:[#allocation3 + $0x8] sm:$0xff]
          %v365 = vld [vmem:[#allocation3 + $0x10] sm:$0xff]
          %v366 = vld [vmem:[#allocation3 + $0x18] sm:$0xff]
          %v367 = vld [vmem:[#allocation3 + $0x20] sm:$0xff]
          %v368 = vld [vmem:[#allocation3 + $0x28] sm:$0xff]
          %v369 = vld [vmem:[#allocation3 + $0x30] sm:$0xff]
          %v370 = vld [vmem:[#allocation3 + $0x38] sm:$0xff]
          %v371 = vld [vmem:[%s1] sm:$0xf]
          %v372 = vld [vmem:[%s2] sm:$0xff]
          %v373 = vld [vmem:[%s2 + $0x8] sm:$0xff]
          %v374 = vld [vmem:[%s2 + $0x10] sm:$0xff]
          %v375 = vld [vmem:[%s2 + $0x18] sm:$0xff]
          %v376 = vld [vmem:[%s2 + $0x20] sm:$0xff]
          %v377 = vld [vmem:[%s2 + $0x28] sm:$0xff]
          %v378 = vld [vmem:[%s2 + $0x30] sm:$0xff]
          %v379 = vld [vmem:[%s2 + $0x38] sm:$0xff]
          %vm380 = vcmask 523264
          %v382 = vsel %vm380, %v371, 0
          %384 = vmatpush.msra.mxu0 0.0
          %385 = vmatpush.msra.mxu0 0.0
          %386 = vmatpush.msra.mxu0 0.0
          %387 = vmatpush.msra.mxu0 0.0
          %388 = vmatpush.msra.mxu0 0.0
          %389 = vmatpush.msra.mxu0 0.0
          %390 = vmatpush.msra.mxu0 0.0
          %391 = vmatpush.msra.mxu0 0.0
          %392 = vmatpush.msra.mxu0 %v362
          %393 = vmatpush.msra.mxu0 %v361
          %394 = vmatpush.msra.mxu0 %v360
          %395 = vmatpush.msra.mxu0 %v359
          %396 = vmatpush.msra.mxu0 %v358
          %397 = vmatpush.msra.mxu0 %v357
          %398 = vmatpush.msra.mxu0 %v356
          %399 = vmatpush.msra.mxu0 %v355
          %400 = vmatmul.f32.gmra.mxu0 %v382
          %v401 = vpop.f32.mrf.mxu0
          %v402 = vadd.f32 0.0, %v401
          %403 = vdwg.mxu0
          %v404 = vmax.f32 %v402, 0.0
          %405 = vmatpush.msra.mxu0 0.0
          %406 = vmatpush.msra.mxu0 0.0
          %407 = vmatpush.msra.mxu0 0.0
          %408 = vmatpush.msra.mxu0 0.0
          %409 = vmatpush.msra.mxu0 0.0
          %410 = vmatpush.msra.mxu0 0.0
          %411 = vmatpush.msra.mxu0 0.0
          %412 = vmatpush.msra.mxu0 0.0
          %413 = vmatpush.msra.mxu0 %v370
          %414 = vmatpush.msra.mxu0 %v369
          %415 = vmatpush.msra.mxu0 %v368
          %416 = vmatpush.msra.mxu0 %v367
          %417 = vmatpush.msra.mxu0 %v366
          %418 = vmatpush.msra.mxu0 %v365
          %419 = vmatpush.msra.mxu0 %v364
          %420 = vmatpush.msra.mxu0 %v363
          %421 = vmatmul.f32.gmra.mxu0 %v382
          %v422 = vpop.f32.mrf.mxu0
          %v423 = vadd.f32 0.0, %v422
          %424 = vdwg.mxu0
          %v425 = vmax.f32 %v423, 0.0
          %v426 = vadd.f32 %v404, %v425
          %vm427 = vcmask 31744
          %v429 = vsel %vm427, %v372, 0
          %v432 = vsel %vm427, %v373, 0
          %v435 = vsel %vm427, %v374, 0
          %v438 = vsel %vm427, %v375, 0
          %v441 = vsel %vm427, %v376, 0
          %v444 = vsel %vm427, %v377, 0
          %v447 = vsel %vm427, %v378, 0
          %v450 = vsel %vm427, %v379, 0
          %vm452 = vcmask 1043456
          %v454 = vsel %vm452, %v426, 0
          %456 = vmatpush.msra.mxu0 0.0
          %457 = vmatpush.msra.mxu0 0.0
          %458 = vmatpush.msra.mxu0 0.0
          %459 = vmatpush.msra.mxu0 0.0
          %460 = vmatpush.msra.mxu0 0.0
          %461 = vmatpush.msra.mxu0 0.0
          %462 = vmatpush.msra.mxu0 0.0
          %463 = vmatpush.msra.mxu0 0.0
          %464 = vmatpush.msra.mxu0 0.0
          %465 = vmatpush.msra.mxu0 0.0
          %466 = vmatpush.msra.mxu0 0.0
          %467 = vmatpush.msra.mxu0 0.0
          %468 = vmatpush.msra.mxu0 0.0
          %469 = vmatpush.msra.mxu0 0.0
          %470 = vmatpush.msra.mxu0 0.0
          %471 = vmatpush.msra.mxu0 %v454
          %472 = vmatmul.f32.gmra.mxu0 %v429
          %v473 = vpop.f32.mrf.mxu0
          %v474 = vadd.f32 0.0, %v473
          %475 = vmatmul.f32.gmra.mxu0 %v432
          %v476 = vpop.f32.mrf.mxu0
          %v477 = vadd.f32 0.0, %v476
          %478 = vmatmul.f32.gmra.mxu0 %v435
          %v479 = vpop.f32.mrf.mxu0
          %v480 = vadd.f32 0.0, %v479
          %481 = vmatmul.f32.gmra.mxu0 %v438
          %v482 = vpop.f32.mrf.mxu0
          %v483 = vadd.f32 0.0, %v482
          %484 = vmatmul.f32.gmra.mxu0 %v441
          %v485 = vpop.f32.mrf.mxu0
          %v486 = vadd.f32 0.0, %v485
          %487 = vmatmul.f32.gmra.mxu0 %v444
          %v488 = vpop.f32.mrf.mxu0
          %v489 = vadd.f32 0.0, %v488
          %490 = vmatmul.f32.gmra.mxu0 %v447
          %v491 = vpop.f32.mrf.mxu0
          %v492 = vadd.f32 0.0, %v491
          %493 = vmatmul.f32.gmra.mxu0 %v450
          %v494 = vpop.f32.mrf.mxu0
          %v495 = vadd.f32 0.0, %v494
          %496 = vdwg.mxu0
          %v497 = vxor.u32 %v474, 2147483648
          %v498 = vxor.u32 %v477, 2147483648
          %v499 = vxor.u32 %v480, 2147483648
          %v500 = vxor.u32 %v483, 2147483648
          %v501 = vxor.u32 %v486, 2147483648
          %v502 = vxor.u32 %v489, 2147483648
          %v503 = vxor.u32 %v492, 2147483648
          %v504 = vxor.u32 %v495, 2147483648
          %v505 = vmul.f32 %v497, 1.442695
          %v506 = vpow.pop %v505
          %v507 = vmul.f32 %v498, 1.442695
          %v508 = vpow.pop %v507
          %v509 = vmul.f32 %v499, 1.442695
          %v510 = vpow.pop %v509
          %v511 = vmul.f32 %v500, 1.442695
          %v512 = vpow.pop %v511
          %v513 = vmul.f32 %v501, 1.442695
          %v514 = vpow.pop %v513
          %v515 = vmul.f32 %v502, 1.442695
          %v516 = vpow.pop %v515
          %v517 = vmul.f32 %v503, 1.442695
          %v518 = vpow.pop %v517
          %v519 = vmul.f32 %v504, 1.442695
          %v520 = vpow.pop %v519
          %v521 = vadd.f32 %v506, 1.0
          %v522 = vadd.f32 %v508, 1.0
          %v523 = vadd.f32 %v510, 1.0
          %v524 = vadd.f32 %v512, 1.0
          %v525 = vadd.f32 %v514, 1.0
          %v526 = vadd.f32 %v516, 1.0
          %v527 = vadd.f32 %v518, 1.0
          %v528 = vadd.f32 %v520, 1.0
          %v529 = vrcp.pop %v521
          %v530 = vmul.f32 %v521, %v529
          %v531 = vsub.f32 1.0, %v530
          %v532 = vmul.f32 %v529, %v531
          %v533 = vadd.f32 %v529, %v532
          %vm534 = vweird.f32 %v521
          %vm535 = vweird.f32 %v529
          %vm536 = vmor %vm534, %vm535
          %v537 = vsel %vm536, %v529, %v533
          %v538 = vand.u32 2147483647, %v521
          %vm539 = vcmp.eq.f32.partialorder %v538, 8.507059e+37
          %v540 = vand.u32 %v521, 2147483648
          %v541 = vor.u32 1.1754944e-38, %v540
          %v542 = vsel %vm539, %v541, %v537
          %v543 = vmul.f32 1.0, %v542
          %v544 = vrcp.pop %v522
          %v545 = vmul.f32 %v522, %v544
          %v546 = vsub.f32 1.0, %v545
          %v547 = vmul.f32 %v544, %v546
          %v548 = vadd.f32 %v544, %v547
          %vm549 = vweird.f32 %v522
          %vm550 = vweird.f32 %v544
          %vm551 = vmor %vm549, %vm550
          %v552 = vsel %vm551, %v544, %v548
          %v553 = vand.u32 2147483647, %v522
          %vm554 = vcmp.eq.f32.partialorder %v553, 8.507059e+37
          %v555 = vand.u32 %v522, 2147483648
          %v556 = vor.u32 1.1754944e-38, %v555
          %v557 = vsel %vm554, %v556, %v552
          %v558 = vmul.f32 1.0, %v557
          %v559 = vrcp.pop %v523
          %v560 = vmul.f32 %v523, %v559
          %v561 = vsub.f32 1.0, %v560
          %v562 = vmul.f32 %v559, %v561
          %v563 = vadd.f32 %v559, %v562
          %vm564 = vweird.f32 %v523
          %vm565 = vweird.f32 %v559
          %vm566 = vmor %vm564, %vm565
          %v567 = vsel %vm566, %v559, %v563
          %v568 = vand.u32 2147483647, %v523
          %vm569 = vcmp.eq.f32.partialorder %v568, 8.507059e+37
          %v570 = vand.u32 %v523, 2147483648
          %v571 = vor.u32 1.1754944e-38, %v570
          %v572 = vsel %vm569, %v571, %v567
          %v573 = vmul.f32 1.0, %v572
          %v574 = vrcp.pop %v524
          %v575 = vmul.f32 %v524, %v574
          %v576 = vsub.f32 1.0, %v575
          %v577 = vmul.f32 %v574, %v576
          %v578 = vadd.f32 %v574, %v577
          %vm579 = vweird.f32 %v524
          %vm580 = vweird.f32 %v574
          %vm581 = vmor %vm579, %vm580
          %v582 = vsel %vm581, %v574, %v578
          %v583 = vand.u32 2147483647, %v524
          %vm584 = vcmp.eq.f32.partialorder %v583, 8.507059e+37
          %v585 = vand.u32 %v524, 2147483648
          %v586 = vor.u32 1.1754944e-38, %v585
          %v587 = vsel %vm584, %v586, %v582
          %v588 = vmul.f32 1.0, %v587
          %v589 = vrcp.pop %v525
          %v590 = vmul.f32 %v525, %v589
          %v591 = vsub.f32 1.0, %v590
          %v592 = vmul.f32 %v589, %v591
          %v593 = vadd.f32 %v589, %v592
          %vm594 = vweird.f32 %v525
          %vm595 = vweird.f32 %v589
          %vm596 = vmor %vm594, %vm595
          %v597 = vsel %vm596, %v589, %v593
          %v598 = vand.u32 2147483647, %v525
          %vm599 = vcmp.eq.f32.partialorder %v598, 8.507059e+37
          %v600 = vand.u32 %v525, 2147483648
          %v601 = vor.u32 1.1754944e-38, %v600
          %v602 = vsel %vm599, %v601, %v597
          %v603 = vmul.f32 1.0, %v602
          %v604 = vrcp.pop %v526
          %v605 = vmul.f32 %v526, %v604
          %v606 = vsub.f32 1.0, %v605
          %v607 = vmul.f32 %v604, %v606
          %v608 = vadd.f32 %v604, %v607
          %vm609 = vweird.f32 %v526
          %vm610 = vweird.f32 %v604
          %vm611 = vmor %vm609, %vm610
          %v612 = vsel %vm611, %v604, %v608
          %v613 = vand.u32 2147483647, %v526
          %vm614 = vcmp.eq.f32.partialorder %v613, 8.507059e+37
          %v615 = vand.u32 %v526, 2147483648
          %v616 = vor.u32 1.1754944e-38, %v615
          %v617 = vsel %vm614, %v616, %v612
          %v618 = vmul.f32 1.0, %v617
          %v619 = vrcp.pop %v527
          %v620 = vmul.f32 %v527, %v619
          %v621 = vsub.f32 1.0, %v620
          %v622 = vmul.f32 %v619, %v621
          %v623 = vadd.f32 %v619, %v622
          %vm624 = vweird.f32 %v527
          %vm625 = vweird.f32 %v619
          %vm626 = vmor %vm624, %vm625
          %v627 = vsel %vm626, %v619, %v623
          %v628 = vand.u32 2147483647, %v527
          %vm629 = vcmp.eq.f32.partialorder %v628, 8.507059e+37
          %v630 = vand.u32 %v527, 2147483648
          %v631 = vor.u32 1.1754944e-38, %v630
          %v632 = vsel %vm629, %v631, %v627
          %v633 = vmul.f32 1.0, %v632
          %v634 = vrcp.pop %v528
          %v635 = vmul.f32 %v528, %v634
          %v636 = vsub.f32 1.0, %v635
          %v637 = vmul.f32 %v634, %v636
          %v638 = vadd.f32 %v634, %v637
          %vm639 = vweird.f32 %v528
          %vm640 = vweird.f32 %v634
          %vm641 = vmor %vm639, %vm640
          %v642 = vsel %vm641, %v634, %v638
          %v643 = vand.u32 2147483647, %v528
          %vm644 = vcmp.eq.f32.partialorder %v643, 8.507059e+37
          %v645 = vand.u32 %v528, 2147483648
          %v646 = vor.u32 1.1754944e-38, %v645
          %v647 = vsel %vm644, %v646, %v642
          %v648 = vmul.f32 1.0, %v647
          %649 = vst.msk [vmem:[%s209] sm:$0xff] %vm287, %v543
          %650 = vst.msk [vmem:[%s209 + $0x8] sm:$0xff] %vm287, %v558
          %651 = vst.msk [vmem:[%s209 + $0x10] sm:$0xff] %vm287, %v573
          %652 = vst.msk [vmem:[%s209 + $0x18] sm:$0xff] %vm287, %v588
          %653 = vst.msk [vmem:[%s209 + $0x20] sm:$0xff] %vm287, %v603
          %654 = vst.msk [vmem:[%s209 + $0x28] sm:$0xff] %vm287, %v618
          %655 = vst.msk [vmem:[%s209 + $0x30] sm:$0xff] %vm287, %v633
          %656 = vst.msk [vmem:[%s209 + $0x38] sm:$0xff] %vm287, %v648
        $region44: #{tpu_custom_call.1} parent=31 // pred_fallthru
          _
        %p657 = scmp.lt.s32.totalorder %s21, 1
        %s658 = scalar_select %p657, %s21, 1
        %s659 = smul.addr %s658, 8
        %s660 = smul.addr %s659, 8
        %s661 = scalar_lea.vmem %s3, %s660
        // Predicated region
        $region45: #{tpu_custom_call.1} parent=31 // pred_check
          %p662 = pneg %p117
        $region46: #{tpu_custom_call.1} parent=31 // pred_check_branch
          %664 = sbr.rel (%p662) target = $region48
        $region47: #{tpu_custom_call.1} parent=31 // pred_region
          _
        $region48: #{tpu_custom_call.1} parent=31 // pred_fallthru
          _
      $region32: #{tpu_custom_call.1} parent=5 // pred_fallthru
        _
      %p665 = scmp.le.s32.totalorder 2, %s12
      // Predicated region
      $region49: #{tpu_custom_call.1} parent=5 // pred_check
        %p666 = pneg %p665
      $region50: #{tpu_custom_call.1} parent=5 // pred_check_branch
        %668 = sbr.rel (%p666) target = $region52
      $region51: #{tpu_custom_call.1} parent=5 // pred_region
        %s669 = ssub.s32 %s12, 2
        // Predicated region
        $region53: #{tpu_custom_call.1} parent=51 // pred_check
          %p670 = pneg %p123
        $region54: #{tpu_custom_call.1} parent=51 // pred_check_branch
          %672 = sbr.rel (%p670) target = $region56
        $region55: #{tpu_custom_call.1} parent=51 // pred_region
          %p673 = scmp.lt.s32.totalorder %s23, 1
          %s674 = scalar_select %p673, %s23, 1
          %s675 = smul.addr %s674, 8
          %s676 = smul.addr %s675, 8
          %s677 = scalar_lea.vmem %s3, %s676
        $region56: #{tpu_custom_call.1} parent=51 // pred_fallthru
          _
      $region52: #{tpu_custom_call.1} parent=5 // pred_fallthru
        _
    $region6: #{tpu_custom_call.1} parent=1 // loop_footer
      %s16 = sadd.s32 1, %s12
    $region7: #{tpu_custom_call.1} parent=1 // loop_footer_branch
      %11 = sbr.rel target = $region3
    $region8: #{tpu_custom_call.1} parent=1 // loop_exit
      _
    %678 = vsyncpa [#allocation5], 1
    %s679 = scalar_lea.sflag [#allocation5], 1
    %680 = vsyncpa %s679, 1

</llo_original>
